<compile_context>
chip_gen: v5e
topology: v5e:2x2
jax: 0.10.0
libtpu: 0.0.40
codegen_flags: <defaults>
</compile_context>

<pallas_src>
import jax
import jax.numpy as jnp
from jax.experimental import pallas as pl
from jax.experimental.pallas import tpu as pltpu


def _round_up(x, m):
    return ((x + m - 1) // m) * m


def _tpu_config():
    """Per-generation defaults: tile_m, VMEM budget, activation dtype, min steps."""
    try:
        kind = jax.devices()[0].device_kind.lower()
    except Exception:
        kind = ""
    if "v5" in kind:          # no bf16 VPU/EUP; 128 MiB VMEM, keep f32 act math
        return dict(gen="v5e", tile_m=512, vmem=64 << 20,
                    act_bf16=False, min_steps=2)
    if "v7" in kind or "7x" in kind:   # 64 MiB physical VMEM/TC, 2 TCs
        return dict(gen="v7x", tile_m=512, vmem=48 << 20,
                    act_bf16=True, min_steps=4)
    if "v6" in kind:          # 128 MiB VMEM, bf16 VPU/EUP
        return dict(gen="v6e", tile_m=1024, vmem=96 << 20,
                    act_bf16=True, min_steps=2)
    return dict(gen="unknown", tile_m=512, vmem=64 << 20,
                act_bf16=False, min_steps=2)


def _vmem_footprint(tm, D, H, x_itemsize, act_bf16):
    """Rough VMEM bytes for one grid step with the chosen tiling."""
    io = 2 * tm * D * x_itemsize          # input token tile, double-buffered
    io += 2 * tm * D * x_itemsize         # output tile, double-buffered
    weights = 2 * (D * H + H * D)         # resident bf16 w1 + w2 (Buffered(1))
    weights += (H + D) * 4                # biases (<= f32)
    hidden = tm * H * (4 + 2)             # f32 accumulate + bf16 copy of h
    hidden = hidden if act_bf16 else tm * H * (4 + 4 + 2)  # f32 GELU path keeps f32 h
    y_acc = tm * D * 4                    # second-matmul f32 accumulator
    return io + weights + hidden + y_acc


def _choose_tile_m(n_tokens, requested, D, H, x_itemsize, act_bf16,
                   vmem_limit, min_steps):
    """Row tile: as large as requested, clamped to the problem, the VMEM
    budget, and to >= min_steps grid steps when there's enough work."""
    tm = min(requested, _round_up(n_tokens, 8))
    tm = _round_up(max(tm, 8), 8)
    budget = int(vmem_limit * 0.9)        # headroom for compiler scratch / sems
    while tm > 128 and _vmem_footprint(tm, D, H, x_itemsize, act_bf16) > budget:
        tm //= 2
        tm = _round_up(max(tm, 8), 8)
    while tm > 128 and pl.cdiv(n_tokens, tm) < min_steps:
        tm //= 2
        tm = _round_up(max(tm, 8), 8)
    return tm


def _make_residual_mlp_kernel(act_bf16):
    def kernel(x_ref, w1_ref, b1_ref, w2_ref, b2_ref, o_ref):
        # First matmul: bf16 operands, f32 accumulate on the MXU.
        h = jnp.dot(x_ref[...].astype(jnp.bfloat16), w1_ref[...],
                    preferred_element_type=jnp.float32)
        # TODO(synk): PyTorch nn.GELU() default is exact erf; tanh approx
        # here matches nn.GELU(approximate='tanh') (~1e-3 deviation).
        if act_bf16:
            # v6e/v7x: bias-add + GELU in bf16 (bf16 VPU/EUP) — halves the
            # (tm, H) intermediate and VALU cost; feeds the MXU directly.
            h = jax.nn.gelu(h.astype(jnp.bfloat16) + b1_ref[...],
                            approximate=True)
        else:
            # v5e: no bf16 VPU/EUP — keep f32 math, cast once for the MXU.
            h = jax.nn.gelu(h + b1_ref[...],
                            approximate=True).astype(jnp.bfloat16)
        # Second matmul: bf16 operands, f32 accumulate.
        y = jnp.dot(h, w2_ref[...], preferred_element_type=jnp.float32)
        y = y + b2_ref[...]
        # Residual add: re-read x_ref here (cheap vld) instead of keeping a
        # (tm, D) f32 residual live across both matmuls; cast only at store.
        o_ref[...] = (y + x_ref[...].astype(jnp.float32)).astype(o_ref.dtype)
    return kernel


def residual_add_mlp(x, w1, b1, w2, b2, *, tile_m=None):
    """out = fn(x) + x with fn = Linear(D,H) -> GELU -> Linear(H,D).

    x : (B, S, D)    w1: (D, H)   b1: (1, H)   w2: (H, D)   b2: (1, D)
    w1/w2 are ideally already bf16 (cast once outside the layer loop).
    """
    B, S, D = x.shape
    H = w1.shape[1]
    N = B * S

    cfg = _tpu_config()
    act_bf16 = cfg["act_bf16"]
    vmem_limit = cfg["vmem"]
    requested = tile_m if tile_m is not None else cfg["tile_m"]
    if tile_m is None and cfg["gen"] == "v6e" and N >= 4 * 2048:
        requested = 2048  # lots of work: amortize per-step overhead further

    tm = _choose_tile_m(N, requested, D, H, x.dtype.itemsize, act_bf16,
                        vmem_limit, cfg["min_steps"])

    x2 = x.reshape(N, D)

    # Weights should already be bf16 (no-op casts then); otherwise cast here.
    w1b = w1 if w1.dtype == jnp.bfloat16 else w1.astype(jnp.bfloat16)
    w2b = w2 if w2.dtype == jnp.bfloat16 else w2.astype(jnp.bfloat16)
    act_dtype = jnp.bfloat16 if act_bf16 else jnp.float32
    b1a = b1.astype(act_dtype)      # tiny (1, H)
    b2f = b2.astype(jnp.float32)    # tiny (1, D); added after f32 accumulate

    grid = (pl.cdiv(N, tm),)        # ragged last tile handled by Pallas; no host pad

    out2 = pl.pallas_call(
        _make_residual_mlp_kernel(act_bf16),
        out_shape=jax.ShapeDtypeStruct((N, D), x.dtype),
        grid_spec=pltpu.PrefetchScalarGridSpec(
            num_scalar_prefetch=0,
            grid=grid,
            in_specs=[
                # streamed token tile (default double-buffering)
                pl.BlockSpec((tm, D), lambda i: (i, 0)),
                # resident weights/biases: constant index_map, single-buffered
                pl.BlockSpec((D, H), lambda i: (0, 0),
                             pipeline_mode=pl.Buffered(1)),
                pl.BlockSpec((1, H), lambda i: (0, 0),
                             pipeline_mode=pl.Buffered(1)),
                pl.BlockSpec((H, D), lambda i: (0, 0),
                             pipeline_mode=pl.Buffered(1)),
                pl.BlockSpec((1, D), lambda i: (0, 0),
                             pipeline_mode=pl.Buffered(1)),
            ],
            out_specs=pl.BlockSpec((tm, D), lambda i: (i, 0)),
        ),
        compiler_params=pltpu.CompilerParams(
            dimension_semantics=("parallel",),
            vmem_limit_bytes=vmem_limit,
        ),
        # NOTE: operand index 0 is x2 because num_scalar_prefetch == 0.  If
        # scalar-prefetch args are ever added, this index must shift too.
        # Each residual tile is read before the same output tile is written,
        # so aliasing the token stream to the output is safe (footprint win).
        input_output_aliases={0: 0},
    )(x2, w1b, b1a, w2b, b2f)

    return out2.reshape(B, S, D)


if __name__ == "__main__":
    # Small ViT-ish shapes: batch=2, seq=8, hidden=32, mlp hidden=128.
    # NOTE: D=32 < 128 lanes -> masked output stores in this tiny demo; real
    # ViT (D=768) is lane-dense and unaffected.
    B, S, D, H = 2, 8, 32, 128

    key = jax.random.PRNGKey(0)
    kx, k1, k2, k3, k4 = jax.random.split(key, 5)

    x = jax.random.normal(kx, (B, S, D), dtype=jnp.float32)
    w1 = jax.random.normal(k1, (D, H), dtype=jnp.float32) * 0.02
    b1 = jax.random.normal(k2, (1, H), dtype=jnp.float32) * 0.02
    w2 = jax.random.normal(k3, (H, D), dtype=jnp.float32) * 0.02
    b2 = jax.random.normal(k4, (1, D), dtype=jnp.float32) * 0.02

    # Cast weights to bf16 once, outside the (conceptual) layer loop.
    w1b = w1.astype(jnp.bfloat16)
    w2b = w2.astype(jnp.bfloat16)

    out = residual_add_mlp(x, w1b, b1, w2b, b2)
    out = jax.block_until_ready(out)

    # Reference (pure JAX, f32) of out = fn(x) + x, using the bf16-rounded
    # weights upcast to f32 so the comparison isolates the kernel's bf16
    # activation path (tolerance documents the expected bf16 deviation).
    w1f = w1b.astype(jnp.float32)
    w2f = w2b.astype(jnp.float32)
    h_ref = jax.nn.gelu(x.reshape(-1, D) @ w1f + b1, approximate=True)
    ref = (h_ref @ w2f + b2 + x.reshape(-1, D)).reshape(B, S, D)
    assert jnp.allclose(out, ref, atol=2e-2, rtol=2e-2), "mismatch vs reference"

    print("KERNEL_OK")
</pallas_src>

<mosaic_0001>
module attributes {stable_mosaic.version = 11 : i64} {
  func.func @kernel(%arg0: i32, %arg1: memref<16x32xf32, #tpu.memory_space<vmem>>, %arg2: memref<32x128xbf16, #tpu.memory_space<vmem>>, %arg3: memref<1x128xf32, #tpu.memory_space<vmem>>, %arg4: memref<128x32xbf16, #tpu.memory_space<vmem>>, %arg5: memref<1x32xf32, #tpu.memory_space<vmem>>, %arg6: memref<16x32xf32, #tpu.memory_space<vmem>>) attributes {dimension_semantics = [#tpu.dimension_semantics<parallel>], iteration_bounds = array<i64: 1>, scalar_prefetch = 0 : i64, scratch_operands = 0 : i64, tpu.core_type = #tpu.core_type<tc>, window_params = [{transform_indices = @transform_0, window_bounds = array<i64: 16, 32>}, {pipeline_mode = #tpu.pipeline_mode<synchronous>, transform_indices = @transform_1, window_bounds = array<i64: 32, 128>}, {pipeline_mode = #tpu.pipeline_mode<synchronous>, transform_indices = @transform_2, window_bounds = array<i64: 1, 128>}, {pipeline_mode = #tpu.pipeline_mode<synchronous>, transform_indices = @transform_3, window_bounds = array<i64: 128, 32>}, {pipeline_mode = #tpu.pipeline_mode<synchronous>, transform_indices = @transform_4, window_bounds = array<i64: 1, 32>}, {transform_indices = @transform_5, window_bounds = array<i64: 16, 32>}]} {
    %c0 = arith.constant 0 : index
    %c0_0 = arith.constant 0 : index
    %0 = vector.load %arg1[%c0, %c0_0] : memref<16x32xf32, #tpu.memory_space<vmem>>, vector<16x32xf32>
    %1 = arith.truncf %0 : vector<16x32xf32> to vector<16x32xbf16>
    %c0_1 = arith.constant 0 : index
    %c0_2 = arith.constant 0 : index
    %2 = vector.load %arg2[%c0_1, %c0_2] : memref<32x128xbf16, #tpu.memory_space<vmem>>, vector<32x128xbf16>
    %cst = arith.constant dense<0.000000e+00> : vector<16x128xf32>
    %3 = tpu.matmul %1, %2, %cst {dimension_numbers = #tpu.dot_dimension_numbers<[1], [0], [0], [1], [0, 0, 1, 1], [], []>} : vector<16x32xbf16>, vector<32x128xbf16>, vector<16x128xf32> -> vector<16x128xf32>
    %c0_3 = arith.constant 0 : index
    %c0_4 = arith.constant 0 : index
    %4 = vector.load %arg3[%c0_3, %c0_4] : memref<1x128xf32, #tpu.memory_space<vmem>>, vector<1x128xf32>
    %5 = vector.broadcast %4 : vector<1x128xf32> to vector<16x128xf32>
    %6 = arith.addf %3, %5 : vector<16x128xf32>
    %7 = arith.mulf %6, %6 : vector<16x128xf32>
    %8 = arith.mulf %6, %7 : vector<16x128xf32>
    %cst_5 = arith.constant 4.471500e-02 : f32
    %9 = vector.broadcast %cst_5 : f32 to vector<16x128xf32>
    %10 = arith.mulf %9, %8 : vector<16x128xf32>
    %11 = arith.addf %6, %10 : vector<16x128xf32>
    %cst_6 = arith.constant 0.797884583 : f32
    %12 = vector.broadcast %cst_6 : f32 to vector<16x128xf32>
    %13 = arith.mulf %12, %11 : vector<16x128xf32>
    %14 = math.tanh %13 : vector<16x128xf32>
    %cst_7 = arith.constant 1.000000e+00 : f32
    %15 = vector.broadcast %cst_7 : f32 to vector<16x128xf32>
    %16 = arith.addf %15, %14 : vector<16x128xf32>
    %cst_8 = arith.constant 5.000000e-01 : f32
    %17 = vector.broadcast %cst_8 : f32 to vector<16x128xf32>
    %18 = arith.mulf %17, %16 : vector<16x128xf32>
    %19 = arith.mulf %6, %18 : vector<16x128xf32>
    %20 = arith.truncf %19 : vector<16x128xf32> to vector<16x128xbf16>
    %c0_9 = arith.constant 0 : index
    %c0_10 = arith.constant 0 : index
    %21 = vector.load %arg4[%c0_9, %c0_10] : memref<128x32xbf16, #tpu.memory_space<vmem>>, vector<128x32xbf16>
    %cst_11 = arith.constant dense<0.000000e+00> : vector<16x32xf32>
    %22 = tpu.matmul %20, %21, %cst_11 {dimension_numbers = #tpu.dot_dimension_numbers<[1], [0], [0], [1], [0, 0, 1, 1], [], []>} : vector<16x128xbf16>, vector<128x32xbf16>, vector<16x32xf32> -> vector<16x32xf32>
    %c0_12 = arith.constant 0 : index
    %c0_13 = arith.constant 0 : index
    %23 = vector.load %arg5[%c0_12, %c0_13] : memref<1x32xf32, #tpu.memory_space<vmem>>, vector<1x32xf32>
    %24 = vector.broadcast %23 : vector<1x32xf32> to vector<16x32xf32>
    %25 = arith.addf %22, %24 : vector<16x32xf32>
    %c0_14 = arith.constant 0 : index
    %c0_15 = arith.constant 0 : index
    %26 = vector.load %arg1[%c0_14, %c0_15] : memref<16x32xf32, #tpu.memory_space<vmem>>, vector<16x32xf32>
    %27 = arith.addf %25, %26 : vector<16x32xf32>
    %c0_16 = arith.constant 0 : index
    %c0_17 = arith.constant 0 : index
    %28 = vector.load %arg6[%c0_16, %c0_17] : memref<16x32xf32, #tpu.memory_space<vmem>>, vector<16x32xf32>
    tpu.vector_store %arg6[%c0_16, %c0_17], %27 {strides = array<i32>} : memref<16x32xf32, #tpu.memory_space<vmem>>, vector<16x32xf32>,
    return
  }
  func.func @transform_0(%arg0: i32) -> (i32, i32) {
    %c0_i32 = arith.constant 0 : i32
    %c0_i32_0 = arith.constant 0 : i32
    return %arg0, %c0_i32 : i32, i32
  }
  func.func @transform_1(%arg0: i32) -> (i32, i32) {
    %c0_i32 = arith.constant 0 : i32
    %c0_i32_0 = arith.constant 0 : i32
    %c0_i32_1 = arith.constant 0 : i32
    return %c0_i32, %c0_i32_0 : i32, i32
  }
  func.func @transform_2(%arg0: i32) -> (i32, i32) {
    %c0_i32 = arith.constant 0 : i32
    %c0_i32_0 = arith.constant 0 : i32
    %c0_i32_1 = arith.constant 0 : i32
    return %c0_i32, %c0_i32_0 : i32, i32
  }
  func.func @transform_3(%arg0: i32) -> (i32, i32) {
    %c0_i32 = arith.constant 0 : i32
    %c0_i32_0 = arith.constant 0 : i32
    %c0_i32_1 = arith.constant 0 : i32
    return %c0_i32, %c0_i32_0 : i32, i32
  }
  func.func @transform_4(%arg0: i32) -> (i32, i32) {
    %c0_i32 = arith.constant 0 : i32
    %c0_i32_0 = arith.constant 0 : i32
    %c0_i32_1 = arith.constant 0 : i32
    return %c0_i32, %c0_i32_0 : i32, i32
  }
  func.func @transform_5(%arg0: i32) -> (i32, i32) {
    %c0_i32 = arith.constant 0 : i32
    %c0_i32_0 = arith.constant 0 : i32
    return %arg0, %c0_i32 : i32, i32
  }
}

</mosaic_0001>

<llo_original>
// kernel: tpu_custom_call.1
$region0: #{tpu_custom_call.1}
  #allocation0 [shape = 'u32[]', space=smem, size = 0x4, offset = 0x4, fixed_abs, tag = 'smem constant byte address 0x4 - core index']
  #allocation1 [shape = 'u32[72,128]{1,0:T(1,128)}', space=vmem, size = 0x9000, scoped, tag = 'internal scratch']
  %s0 = inlined_call_operand.hbm [shape: f32[16,32], index: 0, kind: input, shape index: {}, may-alias: {0,5}]
  %s1 = inlined_call_operand.vmem [shape: bf16[32,128], index: 1, kind: input, shape index: {}]
  %s2 = inlined_call_operand.vmem [shape: f32[1,128], index: 2, kind: input, shape index: {}]
  %s3 = inlined_call_operand.vmem [shape: bf16[128,32], index: 3, kind: input, shape index: {}]
  %s4 = inlined_call_operand.vmem [shape: f32[1,32], index: 4, kind: input, shape index: {}]
  %s5 = inlined_call_operand.hbm [shape: f32[16,32], index: 5, kind: output, shape index: {}, may-alias: {0,5}]
  %s6 = sld [smem:[#allocation0]]
  $region34: #{tpu_custom_call.1} parent=0
    _
  %s8 = ssub.s32 1, %s6
  %s9 = scalar_select 0, %s8, %s6
  $region1: #{tpu_custom_call.1} parent=0
    #allocation2 [shape = 'u8[8192]{0}', space=vmem, size = 0x2000, scoped, tag = 'input window, operand 0, single buffered']
    #allocation3 [shape = 's32[1]{0}', space=sflag, size = 0x4, scoped, tag = 'scoped memory for tpu_custom_call.1']
    #allocation4 [shape = 's32[1]{0}', space=sflag, size = 0x4, scoped, tag = 'scoped memory for tpu_custom_call.1']
    #allocation5 [shape = 'u8[8192]{0}', space=vmem, size = 0x2000, scoped, tag = 'output window, operand 0, single buffered']
    %10 = vsyncpa [#allocation3], 0
    %11 = vsyncpa [#allocation4], 0
    // Predicated region
    $region2: #{tpu_custom_call.1} parent=1 // pred_check
      _
    $region3: #{tpu_custom_call.1} parent=1 // pred_check_branch
      %13 = sbr.rel (0) target = $region5
    $region4: #{tpu_custom_call.1} parent=1 // pred_region
      %15 = vsyncadd [#allocation3], 0
      %s16 = sshll.u32 %s0, 4
      %s17 = int_to_ptr.hbm [resolvable:$true] %s16
      %s18 = sshll.u32 [#allocation2], 4
      %s19 = int_to_ptr.vmem [resolvable:$true] %s18
      %24 = dma.hbm_to_vmem [thread:$0]  %s17, 256, %s19, [#allocation3], 128, 128, 8
    $region5: #{tpu_custom_call.1} parent=1 // pred_fallthru
      _
    // Predicated region
    $region6: #{tpu_custom_call.1} parent=1 // pred_check
      _
    $region7: #{tpu_custom_call.1} parent=1 // pred_check_branch
      %26 = sbr.rel (0) target = $region9
    $region8: #{tpu_custom_call.1} parent=1 // pred_region
      _
    $region9: #{tpu_custom_call.1} parent=1 // pred_fallthru
      _
    // Predicated region
    $region10: #{tpu_custom_call.1} parent=1 // pred_check
      _
    $region11: #{tpu_custom_call.1} parent=1 // pred_check_branch
      %28 = sbr.rel (0) target = $region13
    $region12: #{tpu_custom_call.1} parent=1 // pred_region
      _
    $region13: #{tpu_custom_call.1} parent=1 // pred_fallthru
      _
    // Predicated region
    $region14: #{tpu_custom_call.1} parent=1 // pred_check
      _
    $region15: #{tpu_custom_call.1} parent=1 // pred_check_branch
      %30 = sbr.rel (0) target = $region17
    $region16: #{tpu_custom_call.1} parent=1 // pred_region
      _
    $region17: #{tpu_custom_call.1} parent=1 // pred_fallthru
      _
    // Predicated region
    $region18: #{tpu_custom_call.1} parent=1 // pred_check
      _
    $region19: #{tpu_custom_call.1} parent=1 // pred_check_branch
      %32 = sbr.rel (0) target = $region21
    $region20: #{tpu_custom_call.1} parent=1 // pred_region
      _
    $region21: #{tpu_custom_call.1} parent=1 // pred_fallthru
      _
    // Predicated region
    $region22: #{tpu_custom_call.1} parent=1 // pred_check
      _
    $region23: #{tpu_custom_call.1} parent=1 // pred_check_branch
      %34 = sbr.rel (0) target = $region25
    $region24: #{tpu_custom_call.1} parent=1 // pred_region
      %36 = dma.done [#allocation3], 256
    $region25: #{tpu_custom_call.1} parent=1 // pred_fallthru
      _
    %v38 = vld [vmem:[#allocation2] sm:$0xff]
    %v39 = vld [vmem:[#allocation2 + $0x8] sm:$0xff]
    %v40 = vpack.c.bf16 %v39, %v38
    %v41 = vld [vmem:[%s1] sm:$0xf]
    %v42 = vld [vmem:[%s1 + $0x4] sm:$0xf]
    %v43 = vld [vmem:[%s1 + $0x8] sm:$0xf]
    %v44 = vld [vmem:[%s1 + $0xc] sm:$0xf]
    %v45 = vld [vmem:[%s2] sm:$0x1]
    %v47 = vperm.slane %v45, 0
    %v53 = vunpack.c.l.b16 %v41
    %v54 = vunpack.c.l.b16 %v42
    %v55 = vunpack.c.l.b16 %v43
    %v56 = vunpack.c.l.b16 %v44
    %v57 = vpack.c.b16 %v54, %v53
    %v58 = vpack.c.b16 %v56, %v55
    %vm61 = vcmask 261120
    %v63 = vsel %vm61, %v40, 0
    %65 = vmatpush.bf16.msra.mxu0 0
    %66 = vmatpush.bf16.msra.mxu0 0
    %67 = vmatpush.bf16.msra.mxu0 0
    %68 = vmatpush.bf16.msra.mxu0 0
    %69 = vmatpush.bf16.msra.mxu0 0
    %70 = vmatpush.bf16.msra.mxu0 0
    %71 = vmatpush.bf16.msra.mxu0 %v58
    %72 = vmatpush.bf16.msra.mxu0 %v57
    %73 = vmatmul.bf16.gmra.mxu0 %v63
    %v74 = vpop.f32.mrf.mxu0
    %v75 = vadd.f32 %v47, %v74
    %v76 = vpop.f32.mrf.mxu0
    %v77 = vadd.f32 %v47, %v76
    %78 = vdwg.mxu0
    %v79 = vmul.f32 %v75, %v75
    %v80 = vmul.f32 %v77, %v77
    %v81 = vmul.f32 %v75, %v79
    %v82 = vmul.f32 %v77, %v80
    %v83 = vmul.f32 %v81, 0.044715
    %v84 = vmul.f32 %v82, 0.044715
    %v85 = vadd.f32 %v75, %v83
    %v86 = vadd.f32 %v77, %v84
    %v87 = vmul.f32 %v85, 0.7978846
    %v88 = vmul.f32 %v86, 0.7978846
    %v89 = vtanh.pop %v87
    %v90 = vtanh.pop %v88
    %v91 = vadd.f32 %v89, 1.0
    %v92 = vadd.f32 %v90, 1.0
    %v93 = vmul.f32 %v91, 0.5
    %v94 = vmul.f32 %v92, 0.5
    %v95 = vmul.f32 %v75, %v93
    %v96 = vmul.f32 %v77, %v94
    %v97 = vpack.c.bf16 %v96, %v95
    %v98 = vld [vmem:[%s3] sm:$0xf]
    %v99 = vld [vmem:[%s3 + $0x4] sm:$0xf]
    %v100 = vld [vmem:[%s3 + $0x8] sm:$0xf]
    %v101 = vld [vmem:[%s3 + $0xc] sm:$0xf]
    %v102 = vld [vmem:[%s3 + $0x10] sm:$0xf]
    %v103 = vld [vmem:[%s3 + $0x14] sm:$0xf]
    %v104 = vld [vmem:[%s3 + $0x18] sm:$0xf]
    %v105 = vld [vmem:[%s3 + $0x1c] sm:$0xf]
    %v106 = vld [vmem:[%s3 + $0x20] sm:$0xf]
    %v107 = vld [vmem:[%s3 + $0x24] sm:$0xf]
    %v108 = vld [vmem:[%s3 + $0x28] sm:$0xf]
    %v109 = vld [vmem:[%s3 + $0x2c] sm:$0xf]
    %v110 = vld [vmem:[%s3 + $0x30] sm:$0xf]
    %v111 = vld [vmem:[%s3 + $0x34] sm:$0xf]
    %v112 = vld [vmem:[%s3 + $0x38] sm:$0xf]
    %v113 = vld [vmem:[%s3 + $0x3c] sm:$0xf]
    %v114 = vld [vmem:[%s4] sm:$0x1]
    %v116 = vperm.slane %v114, 0
    %v134 = vunpack.c.l.b16 %v98
    %v135 = vunpack.c.l.b16 %v99
    %v136 = vunpack.c.l.b16 %v100
    %v137 = vunpack.c.l.b16 %v101
    %v138 = vunpack.c.l.b16 %v102
    %v139 = vunpack.c.l.b16 %v103
    %v140 = vunpack.c.l.b16 %v104
    %v141 = vunpack.c.l.b16 %v105
    %v142 = vunpack.c.l.b16 %v106
    %v143 = vunpack.c.l.b16 %v107
    %v144 = vunpack.c.l.b16 %v108
    %v145 = vunpack.c.l.b16 %v109
    %v146 = vunpack.c.l.b16 %v110
    %v147 = vunpack.c.l.b16 %v111
    %v148 = vunpack.c.l.b16 %v112
    %v149 = vunpack.c.l.b16 %v113
    %v150 = vpack.c.b16 %v135, %v134
    %v151 = vpack.c.b16 %v137, %v136
    %v152 = vpack.c.b16 %v139, %v138
    %v153 = vpack.c.b16 %v141, %v140
    %v154 = vpack.c.b16 %v143, %v142
    %v155 = vpack.c.b16 %v145, %v144
    %v156 = vpack.c.b16 %v147, %v146
    %v157 = vpack.c.b16 %v149, %v148
    %166 = vmatpush.bf16.msra.mxu0 %v157
    %167 = vmatpush.bf16.msra.mxu0 %v156
    %168 = vmatpush.bf16.msra.mxu0 %v155
    %169 = vmatpush.bf16.msra.mxu0 %v154
    %170 = vmatpush.bf16.msra.mxu0 %v153
    %171 = vmatpush.bf16.msra.mxu0 %v152
    %172 = vmatpush.bf16.msra.mxu0 %v151
    %173 = vmatpush.bf16.msra.mxu0 %v150
    %174 = vmatmul.bf16.gmra.mxu0 %v97
    %v175 = vpop.f32.mrf.mxu0
    %v176 = vadd.f32 %v116, %v175
    %v177 = vpop.f32.mrf.mxu0
    %v178 = vadd.f32 %v116, %v177
    %179 = vdwg.mxu0
    %v180 = vadd.f32 %v176, %v38
    %v181 = vadd.f32 %v178, %v39
    %182 = vst.msk [vmem:[#allocation5] sm:$0xff] %vm61, %v180
    %183 = vst.msk [vmem:[#allocation5 + $0x8] sm:$0xff] %vm61, %v181
    // Predicated region
    $region26: #{tpu_custom_call.1} parent=1 // pred_check
      _
    $region27: #{tpu_custom_call.1} parent=1 // pred_check_branch
      %185 = sbr.rel (0) target = $region29
    $region28: #{tpu_custom_call.1} parent=1 // pred_region
      %187 = vsyncadd [#allocation4], 0
      %s188 = sshll.u32 [#allocation5], 4
      %s189 = int_to_ptr.vmem [resolvable:$true] %s188
      %s190 = sshll.u32 %s5, 4
      %s191 = int_to_ptr.hbm [resolvable:$true] %s190
      %196 = dma.vmem_to_hbm [thread:$0]  %s189, 256, %s191, [#allocation4], 128, 128, 8
    $region29: #{tpu_custom_call.1} parent=1 // pred_fallthru
      _
    // Predicated region
    $region30: #{tpu_custom_call.1} parent=1 // pred_check
      _
    $region31: #{tpu_custom_call.1} parent=1 // pred_check_branch
      %198 = sbr.rel (0) target = $region33
    $region32: #{tpu_custom_call.1} parent=1 // pred_region
      %200 = dma.done [#allocation4], 256
    $region33: #{tpu_custom_call.1} parent=1 // pred_fallthru
      _
    %201 = vsyncpa [#allocation3], 1
    %202 = vsyncpa [#allocation4], 1

</llo_original>
